<compile_context>
chip_gen: v5e
topology: v5e:2x2
jax: 0.10.0
libtpu: 0.0.40
codegen_flags: <defaults>
</compile_context>

<pallas_src>
import functools
import math

import jax
import jax.numpy as jnp
from jax.experimental import pallas as pl
from jax.experimental.pallas import tpu as pltpu

_LANE = 128
_SUBLANE = 8


def _round_up(x, m):
    return ((x + m - 1) // m) * m


def _mlp_fused_kernel(x_ref, *refs, n_layers):
    """Fused MLP over one row tile: chained dot -> bias -> ReLU, all in VMEM.

    refs = (w0, b0, w1, b1, ..., w_{L-1}, b_{L-1}, out).
    """
    o_ref = refs[-1]
    y = x_ref[...]
    for li in range(n_layers):
        w = refs[2 * li][...]
        b = refs[2 * li + 1][...]
        # At these sizes the kernel is launch/DMA-bound; a near-empty MXU pass
        # per layer is fine. f32 accumulation kept for parity with PyTorch.
        y = jnp.dot(y, w, preferred_element_type=jnp.float32) + b
        if li < n_layers - 1:  # ReLU after every layer except the last
            y = jnp.maximum(y, 0.0)
    o_ref[...] = y.astype(o_ref.dtype)


def _default_min_row_steps():
    """v7x (2 TensorCores/chip) wants >=4 row tiles so each core can pipeline;
    v5e/v6e (1 TC) are best with a single big tile (fewer grid steps)."""
    try:
        kind = jax.devices()[0].device_kind.lower()
    except Exception:
        return 1
    return 4 if "v7" in kind else 1


def _pick_row_tile(n, widths, min_row_steps, vmem_tile_budget_bytes, max_tm):
    """Row tile size: as large as the VMEM budget allows, split into at least
    `min_row_steps` grid steps. Must be a multiple of 8 or equal to n."""
    # Per-row f32 bytes: double-buffered input + output tiles plus the widest
    # intermediate held live during compute (conservative).
    per_row_bytes = 4 * 2 * (widths[0] + widths[-1] + max(widths))
    tm_budget = max(_SUBLANE,
                    (vmem_tile_budget_bytes // per_row_bytes) // _SUBLANE * _SUBLANE)
    tm_budget = min(tm_budget, max_tm)
    tm_target = pl.cdiv(n, max(1, min_row_steps))
    if tm_target >= n and n <= tm_budget:
        # Single grid step: block dims == full array dims, always legal
        # (even if n is not a multiple of 8).
        return n
    tm = min(_round_up(tm_target, _SUBLANE), tm_budget)
    return max(_SUBLANE, tm)


def mlp_forward(x, params, *, min_row_steps=None, max_tm=8192,
                vmem_tile_budget_bytes=16 * 1024 * 1024,
                compute_dtype=jnp.float32):
    """x: (..., in_dim) -> (..., out_dim); whole MLP runs in one Pallas kernel.

    compute_dtype=jnp.bfloat16 halves input/weight HBM bytes on bf16-native
    MXUs (v6e/v7x) at a small numerics cost; default keeps strict f32 parity.
    """
    lead_shape = x.shape[:-1]
    in_dim = x.shape[-1]
    x2d = x.reshape(-1, in_dim).astype(compute_dtype)
    n = x2d.shape[0]
    n_layers = len(params)
    out_dim = params[-1][0].shape[1]
    widths = [in_dim] + [w.shape[1] for (w, _) in params]

    if min_row_steps is None:
        min_row_steps = _default_min_row_steps()

    tm = _pick_row_tile(n, widths, min_row_steps, vmem_tile_budget_bytes, max_tm)
    grid = (pl.cdiv(n, tm),)  # trailing partial block (if any) is masked by Pallas

    in_specs = [pl.BlockSpec((tm, in_dim), lambda i: (i, 0))]  # row tile of x
    flat_args = [x2d]
    for (w, b) in params:
        k, m = w.shape
        # Full weight / bias, constant block index => VMEM-resident across grid.
        in_specs.append(pl.BlockSpec((k, m), lambda i: (0, 0)))
        in_specs.append(pl.BlockSpec((1, m), lambda i: (0, 0)))
        flat_args.append(w.astype(compute_dtype))
        flat_args.append(b.astype(jnp.float32))  # bias added post-dot in f32

    flops = 2 * n * sum(w.shape[0] * w.shape[1] for (w, _) in params)
    itemsize = jnp.dtype(compute_dtype).itemsize
    bytes_accessed = (
        n * in_dim * itemsize + n * out_dim * 4
        + sum(w.size * itemsize + b.size * 4 for (w, b) in params))

    kernel = functools.partial(_mlp_fused_kernel, n_layers=n_layers)
    out = pl.pallas_call(
        kernel,
        out_shape=jax.ShapeDtypeStruct((n, out_dim), jnp.float32),
        grid_spec=pltpu.PrefetchScalarGridSpec(
            num_scalar_prefetch=0,
            grid=grid,
            in_specs=in_specs,
            # Block last dim == full array dim (out_dim): legal without padding,
            # and HBM writeback is exactly n*out_dim*4 bytes (no zero columns).
            out_specs=pl.BlockSpec((tm, out_dim), lambda i: (i, 0)),
        ),
        compiler_params=pltpu.CompilerParams(
            dimension_semantics=("parallel",),
            vmem_limit_bytes=48 * 1024 * 1024),  # safe on v7x (64 MiB physical)
        cost_estimate=pl.CostEstimate(
            flops=flops, transcendentals=0, bytes_accessed=bytes_accessed),
    )(*flat_args)

    return out.reshape(*lead_shape, out_dim)


def init_mlp_params(key, in_dim, hidden_list, out_dim):
    """Deterministic init mimicking nn.Linear's U(-1/sqrt(fan_in), 1/sqrt(fan_in))."""
    dims = [in_dim] + list(hidden_list) + [out_dim]
    params = []
    for i in range(len(dims) - 1):
        fan_in, fan_out = dims[i], dims[i + 1]
        key, kw, kb = jax.random.split(key, 3)
        bound = 1.0 / math.sqrt(fan_in)
        w = jax.random.uniform(kw, (fan_in, fan_out), jnp.float32, -bound, bound)
        b = jax.random.uniform(kb, (1, fan_out), jnp.float32, -bound, bound)
        params.append((w, b))
    return params


def mlp_reference(x, params):
    """Pure-JAX reference for correctness checking."""
    x2d = x.reshape(-1, x.shape[-1]).astype(jnp.float32)
    n_layers = len(params)
    for li, (w, b) in enumerate(params):
        x2d = x2d @ w + b
        if li < n_layers - 1:
            x2d = jnp.maximum(x2d, 0.0)
    return x2d.reshape(*x.shape[:-1], params[-1][0].shape[1])


if __name__ == "__main__":
    # Coordinate-style MLP input: x: (batch=2, H=16, W=16, in_dim=4),
    # hidden_list=[32, 32], out_dim=3.
    in_dim, hidden_list, out_dim = 4, [32, 32], 3

    key = jax.random.PRNGKey(0)
    kx, kp = jax.random.split(key)
    x = jax.random.normal(kx, (2, 16, 16, in_dim), dtype=jnp.float32)
    params = init_mlp_params(kp, in_dim, hidden_list, out_dim)

    out = mlp_forward(x, params)
    out = jax.block_until_ready(out)

    ref = mlp_reference(x, params)
    assert out.shape == (2, 16, 16, out_dim), out.shape
    assert jnp.allclose(out, ref, atol=1e-5, rtol=1e-5), "mismatch vs reference"

    print("KERNEL_OK")
</pallas_src>

<mosaic_0001>
module attributes {stable_mosaic.version = 11 : i64} {
  func.func @_mlp_fused_kernel(%arg0: i32, %arg1: memref<512x4xf32, #tpu.memory_space<vmem>>, %arg2: memref<4x32xf32, #tpu.memory_space<vmem>>, %arg3: memref<1x32xf32, #tpu.memory_space<vmem>>, %arg4: memref<32x32xf32, #tpu.memory_space<vmem>>, %arg5: memref<1x32xf32, #tpu.memory_space<vmem>>, %arg6: memref<32x3xf32, #tpu.memory_space<vmem>>, %arg7: memref<1x3xf32, #tpu.memory_space<vmem>>, %arg8: memref<512x3xf32, #tpu.memory_space<vmem>>) attributes {dimension_semantics = [#tpu.dimension_semantics<parallel>], iteration_bounds = array<i64: 1>, scalar_prefetch = 0 : i64, scratch_operands = 0 : i64, tpu.core_type = #tpu.core_type<tc>, window_params = [{transform_indices = @transform_0, window_bounds = array<i64: 512, 4>}, {pipeline_mode = #tpu.pipeline_mode<synchronous>, transform_indices = @transform_1, window_bounds = array<i64: 4, 32>}, {pipeline_mode = #tpu.pipeline_mode<synchronous>, transform_indices = @transform_2, window_bounds = array<i64: 1, 32>}, {pipeline_mode = #tpu.pipeline_mode<synchronous>, transform_indices = @transform_3, window_bounds = array<i64: 32, 32>}, {pipeline_mode = #tpu.pipeline_mode<synchronous>, transform_indices = @transform_4, window_bounds = array<i64: 1, 32>}, {pipeline_mode = #tpu.pipeline_mode<synchronous>, transform_indices = @transform_5, window_bounds = array<i64: 32, 3>}, {pipeline_mode = #tpu.pipeline_mode<synchronous>, transform_indices = @transform_6, window_bounds = array<i64: 1, 3>}, {transform_indices = @transform_7, window_bounds = array<i64: 512, 3>}]} {
    %c0 = arith.constant 0 : index
    %c0_0 = arith.constant 0 : index
    %0 = vector.load %arg1[%c0, %c0_0] : memref<512x4xf32, #tpu.memory_space<vmem>>, vector<512x4xf32>
    %c0_1 = arith.constant 0 : index
    %c0_2 = arith.constant 0 : index
    %1 = vector.load %arg2[%c0_1, %c0_2] : memref<4x32xf32, #tpu.memory_space<vmem>>, vector<4x32xf32>
    %c0_3 = arith.constant 0 : index
    %c0_4 = arith.constant 0 : index
    %2 = vector.load %arg3[%c0_3, %c0_4] : memref<1x32xf32, #tpu.memory_space<vmem>>, vector<1x32xf32>
    %cst = arith.constant dense<0.000000e+00> : vector<512x32xf32>
    %3 = tpu.matmul %0, %1, %cst {dimension_numbers = #tpu.dot_dimension_numbers<[1], [0], [0], [1], [0, 0, 1, 1], [], []>} : vector<512x4xf32>, vector<4x32xf32>, vector<512x32xf32> -> vector<512x32xf32>
    %4 = vector.broadcast %2 : vector<1x32xf32> to vector<512x32xf32>
    %5 = arith.addf %3, %4 : vector<512x32xf32>
    %cst_5 = arith.constant 0.000000e+00 : f32
    %6 = vector.broadcast %cst_5 : f32 to vector<512x32xf32>
    %7 = arith.maximumf %5, %6 : vector<512x32xf32>
    %c0_6 = arith.constant 0 : index
    %c0_7 = arith.constant 0 : index
    %8 = vector.load %arg4[%c0_6, %c0_7] : memref<32x32xf32, #tpu.memory_space<vmem>>, vector<32x32xf32>
    %c0_8 = arith.constant 0 : index
    %c0_9 = arith.constant 0 : index
    %9 = vector.load %arg5[%c0_8, %c0_9] : memref<1x32xf32, #tpu.memory_space<vmem>>, vector<1x32xf32>
    %cst_10 = arith.constant dense<0.000000e+00> : vector<512x32xf32>
    %10 = tpu.matmul %7, %8, %cst_10 {dimension_numbers = #tpu.dot_dimension_numbers<[1], [0], [0], [1], [0, 0, 1, 1], [], []>} : vector<512x32xf32>, vector<32x32xf32>, vector<512x32xf32> -> vector<512x32xf32>
    %11 = vector.broadcast %9 : vector<1x32xf32> to vector<512x32xf32>
    %12 = arith.addf %10, %11 : vector<512x32xf32>
    %cst_11 = arith.constant 0.000000e+00 : f32
    %13 = vector.broadcast %cst_11 : f32 to vector<512x32xf32>
    %14 = arith.maximumf %12, %13 : vector<512x32xf32>
    %c0_12 = arith.constant 0 : index
    %c0_13 = arith.constant 0 : index
    %15 = vector.load %arg6[%c0_12, %c0_13] : memref<32x3xf32, #tpu.memory_space<vmem>>, vector<32x3xf32>
    %c0_14 = arith.constant 0 : index
    %c0_15 = arith.constant 0 : index
    %16 = vector.load %arg7[%c0_14, %c0_15] : memref<1x3xf32, #tpu.memory_space<vmem>>, vector<1x3xf32>
    %cst_16 = arith.constant dense<0.000000e+00> : vector<512x3xf32>
    %17 = tpu.matmul %14, %15, %cst_16 {dimension_numbers = #tpu.dot_dimension_numbers<[1], [0], [0], [1], [0, 0, 1, 1], [], []>} : vector<512x32xf32>, vector<32x3xf32>, vector<512x3xf32> -> vector<512x3xf32>
    %18 = vector.broadcast %16 : vector<1x3xf32> to vector<512x3xf32>
    %19 = arith.addf %17, %18 : vector<512x3xf32>
    %c0_17 = arith.constant 0 : index
    %c0_18 = arith.constant 0 : index
    %20 = vector.load %arg8[%c0_17, %c0_18] : memref<512x3xf32, #tpu.memory_space<vmem>>, vector<512x3xf32>
    tpu.vector_store %arg8[%c0_17, %c0_18], %19 {strides = array<i32>} : memref<512x3xf32, #tpu.memory_space<vmem>>, vector<512x3xf32>,
    return
  }
  func.func @transform_0(%arg0: i32) -> (i32, i32) {
    %c0_i32 = arith.constant 0 : i32
    %c0_i32_0 = arith.constant 0 : i32
    return %arg0, %c0_i32 : i32, i32
  }
  func.func @transform_1(%arg0: i32) -> (i32, i32) {
    %c0_i32 = arith.constant 0 : i32
    %c0_i32_0 = arith.constant 0 : i32
    %c0_i32_1 = arith.constant 0 : i32
    return %c0_i32, %c0_i32_0 : i32, i32
  }
  func.func @transform_2(%arg0: i32) -> (i32, i32) {
    %c0_i32 = arith.constant 0 : i32
    %c0_i32_0 = arith.constant 0 : i32
    %c0_i32_1 = arith.constant 0 : i32
    return %c0_i32, %c0_i32_0 : i32, i32
  }
  func.func @transform_3(%arg0: i32) -> (i32, i32) {
    %c0_i32 = arith.constant 0 : i32
    %c0_i32_0 = arith.constant 0 : i32
    %c0_i32_1 = arith.constant 0 : i32
    return %c0_i32, %c0_i32_0 : i32, i32
  }
  func.func @transform_4(%arg0: i32) -> (i32, i32) {
    %c0_i32 = arith.constant 0 : i32
    %c0_i32_0 = arith.constant 0 : i32
    %c0_i32_1 = arith.constant 0 : i32
    return %c0_i32, %c0_i32_0 : i32, i32
  }
  func.func @transform_5(%arg0: i32) -> (i32, i32) {
    %c0_i32 = arith.constant 0 : i32
    %c0_i32_0 = arith.constant 0 : i32
    %c0_i32_1 = arith.constant 0 : i32
    return %c0_i32, %c0_i32_0 : i32, i32
  }
  func.func @transform_6(%arg0: i32) -> (i32, i32) {
    %c0_i32 = arith.constant 0 : i32
    %c0_i32_0 = arith.constant 0 : i32
    %c0_i32_1 = arith.constant 0 : i32
    return %c0_i32, %c0_i32_0 : i32, i32
  }
  func.func @transform_7(%arg0: i32) -> (i32, i32) {
    %c0_i32 = arith.constant 0 : i32
    %c0_i32_0 = arith.constant 0 : i32
    return %arg0, %c0_i32 : i32, i32
  }
}

</mosaic_0001>

<llo_original>
// kernel: tpu_custom_call.1
$region0: #{tpu_custom_call.1}
  #allocation0 [shape = 'u32[]', space=smem, size = 0x4, offset = 0x4, fixed_abs, tag = 'smem constant byte address 0x4 - core index']
  #allocation1 [shape = 'u32[72,128]{1,0:T(1,128)}', space=vmem, size = 0x9000, scoped, tag = 'internal scratch']
  %s0 = inlined_call_operand.vmem [shape: f32[512,4], index: 0, kind: input, shape index: {}]
  %s1 = inlined_call_operand.vmem [shape: f32[4,32], index: 1, kind: input, shape index: {}]
  %s2 = inlined_call_operand.vmem [shape: f32[1,32], index: 2, kind: input, shape index: {}]
  %s3 = inlined_call_operand.vmem [shape: f32[32,32], index: 3, kind: input, shape index: {}]
  %s4 = inlined_call_operand.vmem [shape: f32[1,32], index: 4, kind: input, shape index: {}]
  %s5 = inlined_call_operand.vmem [shape: f32[32,3], index: 5, kind: input, shape index: {}]
  %s6 = inlined_call_operand.vmem [shape: f32[1,3], index: 6, kind: input, shape index: {}]
  %s7 = inlined_call_operand.vmem [shape: f32[512,3], index: 7, kind: output, shape index: {}]
  %s8 = sld [smem:[#allocation0]]
  $region38: #{tpu_custom_call.1} parent=0
    _
  %s10 = ssub.s32 1, %s8
  %s11 = scalar_select 0, %s10, %s8
  // Predicated region
  $region2: #{tpu_custom_call.1} parent=0 // pred_check
    _
  $region3: #{tpu_custom_call.1} parent=0 // pred_check_branch
    %13 = sbr.rel (0) target = $region5
  $region4: #{tpu_custom_call.1} parent=0 // pred_region
    _
  $region5: #{tpu_custom_call.1} parent=0 // pred_fallthru
    _
  // Predicated region
  $region6: #{tpu_custom_call.1} parent=0 // pred_check
    _
  $region7: #{tpu_custom_call.1} parent=0 // pred_check_branch
    %15 = sbr.rel (0) target = $region9
  $region8: #{tpu_custom_call.1} parent=0 // pred_region
    _
  $region9: #{tpu_custom_call.1} parent=0 // pred_fallthru
    _
  // Predicated region
  $region10: #{tpu_custom_call.1} parent=0 // pred_check
    _
  $region11: #{tpu_custom_call.1} parent=0 // pred_check_branch
    %17 = sbr.rel (0) target = $region13
  $region12: #{tpu_custom_call.1} parent=0 // pred_region
    _
  $region13: #{tpu_custom_call.1} parent=0 // pred_fallthru
    _
  // Predicated region
  $region14: #{tpu_custom_call.1} parent=0 // pred_check
    _
  $region15: #{tpu_custom_call.1} parent=0 // pred_check_branch
    %19 = sbr.rel (0) target = $region17
  $region16: #{tpu_custom_call.1} parent=0 // pred_region
    _
  $region17: #{tpu_custom_call.1} parent=0 // pred_fallthru
    _
  // Predicated region
  $region18: #{tpu_custom_call.1} parent=0 // pred_check
    _
  $region19: #{tpu_custom_call.1} parent=0 // pred_check_branch
    %21 = sbr.rel (0) target = $region21
  $region20: #{tpu_custom_call.1} parent=0 // pred_region
    _
  $region21: #{tpu_custom_call.1} parent=0 // pred_fallthru
    _
  // Predicated region
  $region22: #{tpu_custom_call.1} parent=0 // pred_check
    _
  $region23: #{tpu_custom_call.1} parent=0 // pred_check_branch
    %23 = sbr.rel (0) target = $region25
  $region24: #{tpu_custom_call.1} parent=0 // pred_region
    _
  $region25: #{tpu_custom_call.1} parent=0 // pred_fallthru
    _
  // Predicated region
  $region26: #{tpu_custom_call.1} parent=0 // pred_check
    _
  $region27: #{tpu_custom_call.1} parent=0 // pred_check_branch
    %25 = sbr.rel (0) target = $region29
  $region28: #{tpu_custom_call.1} parent=0 // pred_region
    _
  $region29: #{tpu_custom_call.1} parent=0 // pred_fallthru
    _
  %v26 = vld [vmem:[%s0] sm:$0xff]
  %v27 = vld [vmem:[%s0 + $0x8] sm:$0xff]
  %v28 = vld [vmem:[%s0 + $0x10] sm:$0xff]
  %v29 = vld [vmem:[%s0 + $0x18] sm:$0xff]
  %v30 = vld [vmem:[%s0 + $0x20] sm:$0xff]
  %v31 = vld [vmem:[%s0 + $0x28] sm:$0xff]
  %v32 = vld [vmem:[%s0 + $0x30] sm:$0xff]
  %v33 = vld [vmem:[%s0 + $0x38] sm:$0xff]
  %v34 = vld [vmem:[%s0 + $0x40] sm:$0xff]
  %v35 = vld [vmem:[%s0 + $0x48] sm:$0xff]
  %v36 = vld [vmem:[%s0 + $0x50] sm:$0xff]
  %v37 = vld [vmem:[%s0 + $0x58] sm:$0xff]
  %v38 = vld [vmem:[%s0 + $0x60] sm:$0xff]
  %v39 = vld [vmem:[%s0 + $0x68] sm:$0xff]
  %v40 = vld [vmem:[%s0 + $0x70] sm:$0xff]
  %v41 = vld [vmem:[%s0 + $0x78] sm:$0xff]
  %v42 = vld [vmem:[%s0 + $0x80] sm:$0xff]
  %v43 = vld [vmem:[%s0 + $0x88] sm:$0xff]
  %v44 = vld [vmem:[%s0 + $0x90] sm:$0xff]
  %v45 = vld [vmem:[%s0 + $0x98] sm:$0xff]
  %v46 = vld [vmem:[%s0 + $0xa0] sm:$0xff]
  %v47 = vld [vmem:[%s0 + $0xa8] sm:$0xff]
  %v48 = vld [vmem:[%s0 + $0xb0] sm:$0xff]
  %v49 = vld [vmem:[%s0 + $0xb8] sm:$0xff]
  %v50 = vld [vmem:[%s0 + $0xc0] sm:$0xff]
  %v51 = vld [vmem:[%s0 + $0xc8] sm:$0xff]
  %v52 = vld [vmem:[%s0 + $0xd0] sm:$0xff]
  %v53 = vld [vmem:[%s0 + $0xd8] sm:$0xff]
  %v54 = vld [vmem:[%s0 + $0xe0] sm:$0xff]
  %v55 = vld [vmem:[%s0 + $0xe8] sm:$0xff]
  %v56 = vld [vmem:[%s0 + $0xf0] sm:$0xff]
  %v57 = vld [vmem:[%s0 + $0xf8] sm:$0xff]
  %v58 = vld [vmem:[%s0 + $0x100] sm:$0xff]
  %v59 = vld [vmem:[%s0 + $0x108] sm:$0xff]
  %v60 = vld [vmem:[%s0 + $0x110] sm:$0xff]
  %v61 = vld [vmem:[%s0 + $0x118] sm:$0xff]
  %v62 = vld [vmem:[%s0 + $0x120] sm:$0xff]
  %v63 = vld [vmem:[%s0 + $0x128] sm:$0xff]
  %v64 = vld [vmem:[%s0 + $0x130] sm:$0xff]
  %v65 = vld [vmem:[%s0 + $0x138] sm:$0xff]
  %v66 = vld [vmem:[%s0 + $0x140] sm:$0xff]
  %v67 = vld [vmem:[%s0 + $0x148] sm:$0xff]
  %v68 = vld [vmem:[%s0 + $0x150] sm:$0xff]
  %v69 = vld [vmem:[%s0 + $0x158] sm:$0xff]
  %v70 = vld [vmem:[%s0 + $0x160] sm:$0xff]
  %v71 = vld [vmem:[%s0 + $0x168] sm:$0xff]
  %v72 = vld [vmem:[%s0 + $0x170] sm:$0xff]
  %v73 = vld [vmem:[%s0 + $0x178] sm:$0xff]
  %v74 = vld [vmem:[%s0 + $0x180] sm:$0xff]
  %v75 = vld [vmem:[%s0 + $0x188] sm:$0xff]
  %v76 = vld [vmem:[%s0 + $0x190] sm:$0xff]
  %v77 = vld [vmem:[%s0 + $0x198] sm:$0xff]
  %v78 = vld [vmem:[%s0 + $0x1a0] sm:$0xff]
  %v79 = vld [vmem:[%s0 + $0x1a8] sm:$0xff]
  %v80 = vld [vmem:[%s0 + $0x1b0] sm:$0xff]
  %v81 = vld [vmem:[%s0 + $0x1b8] sm:$0xff]
  %v82 = vld [vmem:[%s0 + $0x1c0] sm:$0xff]
  %v83 = vld [vmem:[%s0 + $0x1c8] sm:$0xff]
  %v84 = vld [vmem:[%s0 + $0x1d0] sm:$0xff]
  %v85 = vld [vmem:[%s0 + $0x1d8] sm:$0xff]
  %v86 = vld [vmem:[%s0 + $0x1e0] sm:$0xff]
  %v87 = vld [vmem:[%s0 + $0x1e8] sm:$0xff]
  %v88 = vld [vmem:[%s0 + $0x1f0] sm:$0xff]
  %v89 = vld [vmem:[%s0 + $0x1f8] sm:$0xff]
  %v90 = vld [vmem:[%s1] sm:$0xf]
  %v91 = vld [vmem:[%s2] sm:$0x1]
  %v93 = vperm.slane %v91, 0
  %vm95 = vcmask 31744
  %v97 = vsel %vm95, %v26, 0
  %v100 = vsel %vm95, %v27, 0
  %v103 = vsel %vm95, %v28, 0
  %v106 = vsel %vm95, %v29, 0
  %v109 = vsel %vm95, %v30, 0
  %v112 = vsel %vm95, %v31, 0
  %v115 = vsel %vm95, %v32, 0
  %v118 = vsel %vm95, %v33, 0
  %v121 = vsel %vm95, %v34, 0
  %v124 = vsel %vm95, %v35, 0
  %v127 = vsel %vm95, %v36, 0
  %v130 = vsel %vm95, %v37, 0
  %v133 = vsel %vm95, %v38, 0
  %v136 = vsel %vm95, %v39, 0
  %v139 = vsel %vm95, %v40, 0
  %v142 = vsel %vm95, %v41, 0
  %v145 = vsel %vm95, %v42, 0
  %v148 = vsel %vm95, %v43, 0
  %v151 = vsel %vm95, %v44, 0
  %v154 = vsel %vm95, %v45, 0
  %v157 = vsel %vm95, %v46, 0
  %v160 = vsel %vm95, %v47, 0
  %v163 = vsel %vm95, %v48, 0
  %v166 = vsel %vm95, %v49, 0
  %v169 = vsel %vm95, %v50, 0
  %v172 = vsel %vm95, %v51, 0
  %v175 = vsel %vm95, %v52, 0
  %v178 = vsel %vm95, %v53, 0
  %v181 = vsel %vm95, %v54, 0
  %v184 = vsel %vm95, %v55, 0
  %v187 = vsel %vm95, %v56, 0
  %v190 = vsel %vm95, %v57, 0
  %v193 = vsel %vm95, %v58, 0
  %v196 = vsel %vm95, %v59, 0
  %v199 = vsel %vm95, %v60, 0
  %v202 = vsel %vm95, %v61, 0
  %v205 = vsel %vm95, %v62, 0
  %v208 = vsel %vm95, %v63, 0
  %v211 = vsel %vm95, %v64, 0
  %v214 = vsel %vm95, %v65, 0
  %v217 = vsel %vm95, %v66, 0
  %v220 = vsel %vm95, %v67, 0
  %v223 = vsel %vm95, %v68, 0
  %v226 = vsel %vm95, %v69, 0
  %v229 = vsel %vm95, %v70, 0
  %v232 = vsel %vm95, %v71, 0
  %v235 = vsel %vm95, %v72, 0
  %v238 = vsel %vm95, %v73, 0
  %v241 = vsel %vm95, %v74, 0
  %v244 = vsel %vm95, %v75, 0
  %v247 = vsel %vm95, %v76, 0
  %v250 = vsel %vm95, %v77, 0
  %v253 = vsel %vm95, %v78, 0
  %v256 = vsel %vm95, %v79, 0
  %v259 = vsel %vm95, %v80, 0
  %v262 = vsel %vm95, %v81, 0
  %v265 = vsel %vm95, %v82, 0
  %v268 = vsel %vm95, %v83, 0
  %v271 = vsel %vm95, %v84, 0
  %v274 = vsel %vm95, %v85, 0
  %v277 = vsel %vm95, %v86, 0
  %v280 = vsel %vm95, %v87, 0
  %v283 = vsel %vm95, %v88, 0
  %v286 = vsel %vm95, %v89, 0
  %vm288 = vcmask 1043456
  %v290 = vsel %vm288, %v90, 0
  %292 = vmatpush.msra.mxu0 0.0
  %293 = vmatpush.msra.mxu0 0.0
  %294 = vmatpush.msra.mxu0 0.0
  %295 = vmatpush.msra.mxu0 0.0
  %296 = vmatpush.msra.mxu0 0.0
  %297 = vmatpush.msra.mxu0 0.0
  %298 = vmatpush.msra.mxu0 0.0
  %299 = vmatpush.msra.mxu0 0.0
  %300 = vmatpush.msra.mxu0 0.0
  %301 = vmatpush.msra.mxu0 0.0
  %302 = vmatpush.msra.mxu0 0.0
  %303 = vmatpush.msra.mxu0 0.0
  %304 = vmatpush.msra.mxu0 0.0
  %305 = vmatpush.msra.mxu0 0.0
  %306 = vmatpush.msra.mxu0 0.0
  %307 = vmatpush.msra.mxu0 %v290
  %308 = vmatmul.f32.gmra.mxu0 %v97
  %v309 = vpop.f32.mrf.mxu0
  %v310 = vadd.f32 %v93, %v309
  %311 = vmatmul.f32.gmra.mxu0 %v100
  %v312 = vpop.f32.mrf.mxu0
  %v313 = vadd.f32 %v93, %v312
  %314 = vmatmul.f32.gmra.mxu0 %v103
  %v315 = vpop.f32.mrf.mxu0
  %v316 = vadd.f32 %v93, %v315
  %317 = vmatmul.f32.gmra.mxu0 %v106
  %v318 = vpop.f32.mrf.mxu0
  %v319 = vadd.f32 %v93, %v318
  %320 = vmatmul.f32.gmra.mxu0 %v109
  %v321 = vpop.f32.mrf.mxu0
  %v322 = vadd.f32 %v93, %v321
  %323 = vmatmul.f32.gmra.mxu0 %v112
  %v324 = vpop.f32.mrf.mxu0
  %v325 = vadd.f32 %v93, %v324
  %326 = vmatmul.f32.gmra.mxu0 %v115
  %v327 = vpop.f32.mrf.mxu0
  %v328 = vadd.f32 %v93, %v327
  %329 = vmatmul.f32.gmra.mxu0 %v118
  %v330 = vpop.f32.mrf.mxu0
  %v331 = vadd.f32 %v93, %v330
  %332 = vmatmul.f32.gmra.mxu0 %v121
  %v333 = vpop.f32.mrf.mxu0
  %v334 = vadd.f32 %v93, %v333
  %335 = vmatmul.f32.gmra.mxu0 %v124
  %v336 = vpop.f32.mrf.mxu0
  %v337 = vadd.f32 %v93, %v336
  %338 = vmatmul.f32.gmra.mxu0 %v127
  %v339 = vpop.f32.mrf.mxu0
  %v340 = vadd.f32 %v93, %v339
  %341 = vmatmul.f32.gmra.mxu0 %v130
  %v342 = vpop.f32.mrf.mxu0
  %v343 = vadd.f32 %v93, %v342
  %344 = vmatmul.f32.gmra.mxu0 %v133
  %v345 = vpop.f32.mrf.mxu0
  %v346 = vadd.f32 %v93, %v345
  %347 = vmatmul.f32.gmra.mxu0 %v136
  %v348 = vpop.f32.mrf.mxu0
  %v349 = vadd.f32 %v93, %v348
  %350 = vmatmul.f32.gmra.mxu0 %v139
  %v351 = vpop.f32.mrf.mxu0
  %v352 = vadd.f32 %v93, %v351
  %353 = vmatmul.f32.gmra.mxu0 %v142
  %v354 = vpop.f32.mrf.mxu0
  %v355 = vadd.f32 %v93, %v354
  %356 = vmatmul.f32.gmra.mxu0 %v145
  %v357 = vpop.f32.mrf.mxu0
  %v358 = vadd.f32 %v93, %v357
  %359 = vmatmul.f32.gmra.mxu0 %v148
  %v360 = vpop.f32.mrf.mxu0
  %v361 = vadd.f32 %v93, %v360
  %362 = vmatmul.f32.gmra.mxu0 %v151
  %v363 = vpop.f32.mrf.mxu0
  %v364 = vadd.f32 %v93, %v363
  %365 = vmatmul.f32.gmra.mxu0 %v154
  %v366 = vpop.f32.mrf.mxu0
  %v367 = vadd.f32 %v93, %v366
  %368 = vmatmul.f32.gmra.mxu0 %v157
  %v369 = vpop.f32.mrf.mxu0
  %v370 = vadd.f32 %v93, %v369
  %371 = vmatmul.f32.gmra.mxu0 %v160
  %v372 = vpop.f32.mrf.mxu0
  %v373 = vadd.f32 %v93, %v372
  %374 = vmatmul.f32.gmra.mxu0 %v163
  %v375 = vpop.f32.mrf.mxu0
  %v376 = vadd.f32 %v93, %v375
  %377 = vmatmul.f32.gmra.mxu0 %v166
  %v378 = vpop.f32.mrf.mxu0
  %v379 = vadd.f32 %v93, %v378
  %380 = vmatmul.f32.gmra.mxu0 %v169
  %v381 = vpop.f32.mrf.mxu0
  %v382 = vadd.f32 %v93, %v381
  %383 = vmatmul.f32.gmra.mxu0 %v172
  %v384 = vpop.f32.mrf.mxu0
  %v385 = vadd.f32 %v93, %v384
  %386 = vmatmul.f32.gmra.mxu0 %v175
  %v387 = vpop.f32.mrf.mxu0
  %v388 = vadd.f32 %v93, %v387
  %389 = vmatmul.f32.gmra.mxu0 %v178
  %v390 = vpop.f32.mrf.mxu0
  %v391 = vadd.f32 %v93, %v390
  %392 = vmatmul.f32.gmra.mxu0 %v181
  %v393 = vpop.f32.mrf.mxu0
  %v394 = vadd.f32 %v93, %v393
  %395 = vmatmul.f32.gmra.mxu0 %v184
  %v396 = vpop.f32.mrf.mxu0
  %v397 = vadd.f32 %v93, %v396
  %398 = vmatmul.f32.gmra.mxu0 %v187
  %v399 = vpop.f32.mrf.mxu0
  %v400 = vadd.f32 %v93, %v399
  %401 = vmatmul.f32.gmra.mxu0 %v190
  %v402 = vpop.f32.mrf.mxu0
  %v403 = vadd.f32 %v93, %v402
  %404 = vmatmul.f32.gmra.mxu0 %v193
  %v405 = vpop.f32.mrf.mxu0
  %v406 = vadd.f32 %v93, %v405
  %407 = vmatmul.f32.gmra.mxu0 %v196
  %v408 = vpop.f32.mrf.mxu0
  %v409 = vadd.f32 %v93, %v408
  %410 = vmatmul.f32.gmra.mxu0 %v199
  %v411 = vpop.f32.mrf.mxu0
  %v412 = vadd.f32 %v93, %v411
  %413 = vmatmul.f32.gmra.mxu0 %v202
  %v414 = vpop.f32.mrf.mxu0
  %v415 = vadd.f32 %v93, %v414
  %416 = vmatmul.f32.gmra.mxu0 %v205
  %v417 = vpop.f32.mrf.mxu0
  %v418 = vadd.f32 %v93, %v417
  %419 = vmatmul.f32.gmra.mxu0 %v208
  %v420 = vpop.f32.mrf.mxu0
  %v421 = vadd.f32 %v93, %v420
  %422 = vmatmul.f32.gmra.mxu0 %v211
  %v423 = vpop.f32.mrf.mxu0
  %v424 = vadd.f32 %v93, %v423
  %425 = vmatmul.f32.gmra.mxu0 %v214
  %v426 = vpop.f32.mrf.mxu0
  %v427 = vadd.f32 %v93, %v426
  %428 = vmatmul.f32.gmra.mxu0 %v217
  %v429 = vpop.f32.mrf.mxu0
  %v430 = vadd.f32 %v93, %v429
  %431 = vmatmul.f32.gmra.mxu0 %v220
  %v432 = vpop.f32.mrf.mxu0
  %v433 = vadd.f32 %v93, %v432
  %434 = vmatmul.f32.gmra.mxu0 %v223
  %v435 = vpop.f32.mrf.mxu0
  %v436 = vadd.f32 %v93, %v435
  %437 = vmatmul.f32.gmra.mxu0 %v226
  %v438 = vpop.f32.mrf.mxu0
  %v439 = vadd.f32 %v93, %v438
  %440 = vmatmul.f32.gmra.mxu0 %v229
  %v441 = vpop.f32.mrf.mxu0
  %v442 = vadd.f32 %v93, %v441
  %443 = vmatmul.f32.gmra.mxu0 %v232
  %v444 = vpop.f32.mrf.mxu0
  %v445 = vadd.f32 %v93, %v444
  %446 = vmatmul.f32.gmra.mxu0 %v235
  %v447 = vpop.f32.mrf.mxu0
  %v448 = vadd.f32 %v93, %v447
  %449 = vmatmul.f32.gmra.mxu0 %v238
  %v450 = vpop.f32.mrf.mxu0
  %v451 = vadd.f32 %v93, %v450
  %452 = vmatmul.f32.gmra.mxu0 %v241
  %v453 = vpop.f32.mrf.mxu0
  %v454 = vadd.f32 %v93, %v453
  %455 = vmatmul.f32.gmra.mxu0 %v244
  %v456 = vpop.f32.mrf.mxu0
  %v457 = vadd.f32 %v93, %v456
  %458 = vmatmul.f32.gmra.mxu0 %v247
  %v459 = vpop.f32.mrf.mxu0
  %v460 = vadd.f32 %v93, %v459
  %461 = vmatmul.f32.gmra.mxu0 %v250
  %v462 = vpop.f32.mrf.mxu0
  %v463 = vadd.f32 %v93, %v462
  %464 = vmatmul.f32.gmra.mxu0 %v253
  %v465 = vpop.f32.mrf.mxu0
  %v466 = vadd.f32 %v93, %v465
  %467 = vmatmul.f32.gmra.mxu0 %v256
  %v468 = vpop.f32.mrf.mxu0
  %v469 = vadd.f32 %v93, %v468
  %470 = vmatmul.f32.gmra.mxu0 %v259
  %v471 = vpop.f32.mrf.mxu0
  %v472 = vadd.f32 %v93, %v471
  %473 = vmatmul.f32.gmra.mxu0 %v262
  %v474 = vpop.f32.mrf.mxu0
  %v475 = vadd.f32 %v93, %v474
  %476 = vmatmul.f32.gmra.mxu0 %v265
  %v477 = vpop.f32.mrf.mxu0
  %v478 = vadd.f32 %v93, %v477
  %479 = vmatmul.f32.gmra.mxu0 %v268
  %v480 = vpop.f32.mrf.mxu0
  %v481 = vadd.f32 %v93, %v480
  %482 = vmatmul.f32.gmra.mxu0 %v271
  %v483 = vpop.f32.mrf.mxu0
  %v484 = vadd.f32 %v93, %v483
  %485 = vmatmul.f32.gmra.mxu0 %v274
  %v486 = vpop.f32.mrf.mxu0
  %v487 = vadd.f32 %v93, %v486
  %488 = vmatmul.f32.gmra.mxu0 %v277
  %v489 = vpop.f32.mrf.mxu0
  %v490 = vadd.f32 %v93, %v489
  %491 = vmatmul.f32.gmra.mxu0 %v280
  %v492 = vpop.f32.mrf.mxu0
  %v493 = vadd.f32 %v93, %v492
  %494 = vmatmul.f32.gmra.mxu0 %v283
  %v495 = vpop.f32.mrf.mxu0
  %v496 = vadd.f32 %v93, %v495
  %497 = vmatmul.f32.gmra.mxu0 %v286
  %v498 = vpop.f32.mrf.mxu0
  %v499 = vadd.f32 %v93, %v498
  %500 = vdwg.mxu0
  %v501 = vmax.f32 %v310, 0.0
  %v502 = vmax.f32 %v313, 0.0
  %v503 = vmax.f32 %v316, 0.0
  %v504 = vmax.f32 %v319, 0.0
  %v505 = vmax.f32 %v322, 0.0
  %v506 = vmax.f32 %v325, 0.0
  %v507 = vmax.f32 %v328, 0.0
  %v508 = vmax.f32 %v331, 0.0
  %v509 = vmax.f32 %v334, 0.0
  %v510 = vmax.f32 %v337, 0.0
  %v511 = vmax.f32 %v340, 0.0
  %v512 = vmax.f32 %v343, 0.0
  %v513 = vmax.f32 %v346, 0.0
  %v514 = vmax.f32 %v349, 0.0
  %v515 = vmax.f32 %v352, 0.0
  %v516 = vmax.f32 %v355, 0.0
  %v517 = vmax.f32 %v358, 0.0
  %v518 = vmax.f32 %v361, 0.0
  %v519 = vmax.f32 %v364, 0.0
  %v520 = vmax.f32 %v367, 0.0
  %v521 = vmax.f32 %v370, 0.0
  %v522 = vmax.f32 %v373, 0.0
  %v523 = vmax.f32 %v376, 0.0
  %v524 = vmax.f32 %v379, 0.0
  %v525 = vmax.f32 %v382, 0.0
  %v526 = vmax.f32 %v385, 0.0
  %v527 = vmax.f32 %v388, 0.0
  %v528 = vmax.f32 %v391, 0.0
  %v529 = vmax.f32 %v394, 0.0
  %v530 = vmax.f32 %v397, 0.0
  %v531 = vmax.f32 %v400, 0.0
  %v532 = vmax.f32 %v403, 0.0
  %v533 = vmax.f32 %v406, 0.0
  %v534 = vmax.f32 %v409, 0.0
  %v535 = vmax.f32 %v412, 0.0
  %v536 = vmax.f32 %v415, 0.0
  %v537 = vmax.f32 %v418, 0.0
  %v538 = vmax.f32 %v421, 0.0
  %v539 = vmax.f32 %v424, 0.0
  %v540 = vmax.f32 %v427, 0.0
  %v541 = vmax.f32 %v430, 0.0
  %v542 = vmax.f32 %v433, 0.0
  %v543 = vmax.f32 %v436, 0.0
  %v544 = vmax.f32 %v439, 0.0
  %v545 = vmax.f32 %v442, 0.0
  %v546 = vmax.f32 %v445, 0.0
  %v547 = vmax.f32 %v448, 0.0
  %v548 = vmax.f32 %v451, 0.0
  %v549 = vmax.f32 %v454, 0.0
  %v550 = vmax.f32 %v457, 0.0
  %v551 = vmax.f32 %v460, 0.0
  %v552 = vmax.f32 %v463, 0.0
  %v553 = vmax.f32 %v466, 0.0
  %v554 = vmax.f32 %v469, 0.0
  %v555 = vmax.f32 %v472, 0.0
  %v556 = vmax.f32 %v475, 0.0
  %v557 = vmax.f32 %v478, 0.0
  %v558 = vmax.f32 %v481, 0.0
  %v559 = vmax.f32 %v484, 0.0
  %v560 = vmax.f32 %v487, 0.0
  %v561 = vmax.f32 %v490, 0.0
  %v562 = vmax.f32 %v493, 0.0
  %v563 = vmax.f32 %v496, 0.0
  %v564 = vmax.f32 %v499, 0.0
  %v565 = vld [vmem:[%s3] sm:$0xff]
  %v566 = vld [vmem:[%s3 + $0x8] sm:$0xff]
  %v567 = vld [vmem:[%s3 + $0x10] sm:$0xff]
  %v568 = vld [vmem:[%s3 + $0x18] sm:$0xff]
  %v569 = vld [vmem:[%s4] sm:$0x1]
  %v571 = vperm.slane %v569, 0
  %vm573 = vcmask 261120
  %v575 = vsel %vm573, %v501, 0
  %v578 = vsel %vm573, %v502, 0
  %v581 = vsel %vm573, %v503, 0
  %v584 = vsel %vm573, %v504, 0
  %v587 = vsel %vm573, %v505, 0
  %v590 = vsel %vm573, %v506, 0
  %v593 = vsel %vm573, %v507, 0
  %v596 = vsel %vm573, %v508, 0
  %v599 = vsel %vm573, %v509, 0
  %v602 = vsel %vm573, %v510, 0
  %v605 = vsel %vm573, %v511, 0
  %v608 = vsel %vm573, %v512, 0
  %v611 = vsel %vm573, %v513, 0
  %v614 = vsel %vm573, %v514, 0
  %v617 = vsel %vm573, %v515, 0
  %v620 = vsel %vm573, %v516, 0
  %v623 = vsel %vm573, %v517, 0
  %v626 = vsel %vm573, %v518, 0
  %v629 = vsel %vm573, %v519, 0
  %v632 = vsel %vm573, %v520, 0
  %v635 = vsel %vm573, %v521, 0
  %v638 = vsel %vm573, %v522, 0
  %v641 = vsel %vm573, %v523, 0
  %v644 = vsel %vm573, %v524, 0
  %v647 = vsel %vm573, %v525, 0
  %v650 = vsel %vm573, %v526, 0
  %v653 = vsel %vm573, %v527, 0
  %v656 = vsel %vm573, %v528, 0
  %v659 = vsel %vm573, %v529, 0
  %v662 = vsel %vm573, %v530, 0
  %v665 = vsel %vm573, %v531, 0
  %v668 = vsel %vm573, %v532, 0
  %v671 = vsel %vm573, %v533, 0
  %v674 = vsel %vm573, %v534, 0
  %v677 = vsel %vm573, %v535, 0
  %v680 = vsel %vm573, %v536, 0
  %v683 = vsel %vm573, %v537, 0
  %v686 = vsel %vm573, %v538, 0
  %v689 = vsel %vm573, %v539, 0
  %v692 = vsel %vm573, %v540, 0
  %v695 = vsel %vm573, %v541, 0
  %v698 = vsel %vm573, %v542, 0
  %v701 = vsel %vm573, %v543, 0
  %v704 = vsel %vm573, %v544, 0
  %v707 = vsel %vm573, %v545, 0
  %v710 = vsel %vm573, %v546, 0
  %v713 = vsel %vm573, %v547, 0
  %v716 = vsel %vm573, %v548, 0
  %v719 = vsel %vm573, %v549, 0
  %v722 = vsel %vm573, %v550, 0
  %v725 = vsel %vm573, %v551, 0
  %v728 = vsel %vm573, %v552, 0
  %v731 = vsel %vm573, %v553, 0
  %v734 = vsel %vm573, %v554, 0
  %v737 = vsel %vm573, %v555, 0
  %v740 = vsel %vm573, %v556, 0
  %v743 = vsel %vm573, %v557, 0
  %v746 = vsel %vm573, %v558, 0
  %v749 = vsel %vm573, %v559, 0
  %v752 = vsel %vm573, %v560, 0
  %v755 = vsel %vm573, %v561, 0
  %v758 = vsel %vm573, %v562, 0
  %v761 = vsel %vm573, %v563, 0
  %v764 = vsel %vm573, %v564, 0
  %766 = vmatpush.msra.mxu0 0.0
  %767 = vmatpush.msra.mxu0 0.0
  %768 = vmatpush.msra.mxu0 0.0
  %769 = vmatpush.msra.mxu0 0.0
  %770 = vmatpush.msra.mxu0 0.0
  %771 = vmatpush.msra.mxu0 0.0
  %772 = vmatpush.msra.mxu0 0.0
  %773 = vmatpush.msra.mxu0 0.0
  %774 = vmatpush.msra.mxu0 0.0
  %775 = vmatpush.msra.mxu0 0.0
  %776 = vmatpush.msra.mxu0 0.0
  %777 = vmatpush.msra.mxu0 0.0
  %778 = vmatpush.msra.mxu0 %v568
  %779 = vmatpush.msra.mxu0 %v567
  %780 = vmatpush.msra.mxu0 %v566
  %781 = vmatpush.msra.mxu0 %v565
  %782 = vmatmul.f32.gmra.mxu0 %v575
  %v783 = vpop.f32.mrf.mxu0
  %v784 = vadd.f32 %v571, %v783
  %785 = vmatmul.f32.gmra.mxu0 %v578
  %v786 = vpop.f32.mrf.mxu0
  %v787 = vadd.f32 %v571, %v786
  %788 = vmatmul.f32.gmra.mxu0 %v581
  %v789 = vpop.f32.mrf.mxu0
  %v790 = vadd.f32 %v571, %v789
  %791 = vmatmul.f32.gmra.mxu0 %v584
  %v792 = vpop.f32.mrf.mxu0
  %v793 = vadd.f32 %v571, %v792
  %794 = vmatmul.f32.gmra.mxu0 %v587
  %v795 = vpop.f32.mrf.mxu0
  %v796 = vadd.f32 %v571, %v795
  %797 = vmatmul.f32.gmra.mxu0 %v590
  %v798 = vpop.f32.mrf.mxu0
  %v799 = vadd.f32 %v571, %v798
  %800 = vmatmul.f32.gmra.mxu0 %v593
  %v801 = vpop.f32.mrf.mxu0
  %v802 = vadd.f32 %v571, %v801
  %803 = vmatmul.f32.gmra.mxu0 %v596
  %v804 = vpop.f32.mrf.mxu0
  %v805 = vadd.f32 %v571, %v804
  %806 = vmatmul.f32.gmra.mxu0 %v599
  %v807 = vpop.f32.mrf.mxu0
  %v808 = vadd.f32 %v571, %v807
  %809 = vmatmul.f32.gmra.mxu0 %v602
  %v810 = vpop.f32.mrf.mxu0
  %v811 = vadd.f32 %v571, %v810
  %812 = vmatmul.f32.gmra.mxu0 %v605
  %v813 = vpop.f32.mrf.mxu0
  %v814 = vadd.f32 %v571, %v813
  %815 = vmatmul.f32.gmra.mxu0 %v608
  %v816 = vpop.f32.mrf.mxu0
  %v817 = vadd.f32 %v571, %v816
  %818 = vmatmul.f32.gmra.mxu0 %v611
  %v819 = vpop.f32.mrf.mxu0
  %v820 = vadd.f32 %v571, %v819
  %821 = vmatmul.f32.gmra.mxu0 %v614
  %v822 = vpop.f32.mrf.mxu0
  %v823 = vadd.f32 %v571, %v822
  %824 = vmatmul.f32.gmra.mxu0 %v617
  %v825 = vpop.f32.mrf.mxu0
  %v826 = vadd.f32 %v571, %v825
  %827 = vmatmul.f32.gmra.mxu0 %v620
  %v828 = vpop.f32.mrf.mxu0
  %v829 = vadd.f32 %v571, %v828
  %830 = vmatmul.f32.gmra.mxu0 %v623
  %v831 = vpop.f32.mrf.mxu0
  %v832 = vadd.f32 %v571, %v831
  %833 = vmatmul.f32.gmra.mxu0 %v626
  %v834 = vpop.f32.mrf.mxu0
  %v835 = vadd.f32 %v571, %v834
  %836 = vmatmul.f32.gmra.mxu0 %v629
  %v837 = vpop.f32.mrf.mxu0
  %v838 = vadd.f32 %v571, %v837
  %839 = vmatmul.f32.gmra.mxu0 %v632
  %v840 = vpop.f32.mrf.mxu0
  %v841 = vadd.f32 %v571, %v840
  %842 = vmatmul.f32.gmra.mxu0 %v635
  %v843 = vpop.f32.mrf.mxu0
  %v844 = vadd.f32 %v571, %v843
  %845 = vmatmul.f32.gmra.mxu0 %v638
  %v846 = vpop.f32.mrf.mxu0
  %v847 = vadd.f32 %v571, %v846
  %848 = vmatmul.f32.gmra.mxu0 %v641
  %v849 = vpop.f32.mrf.mxu0
  %v850 = vadd.f32 %v571, %v849
  %851 = vmatmul.f32.gmra.mxu0 %v644
  %v852 = vpop.f32.mrf.mxu0
  %v853 = vadd.f32 %v571, %v852
  %854 = vmatmul.f32.gmra.mxu0 %v647
  %v855 = vpop.f32.mrf.mxu0
  %v856 = vadd.f32 %v571, %v855
  %857 = vmatmul.f32.gmra.mxu0 %v650
  %v858 = vpop.f32.mrf.mxu0
  %v859 = vadd.f32 %v571, %v858
  %860 = vmatmul.f32.gmra.mxu0 %v653
  %v861 = vpop.f32.mrf.mxu0
  %v862 = vadd.f32 %v571, %v861
  %863 = vmatmul.f32.gmra.mxu0 %v656
  %v864 = vpop.f32.mrf.mxu0
  %v865 = vadd.f32 %v571, %v864
  %866 = vmatmul.f32.gmra.mxu0 %v659
  %v867 = vpop.f32.mrf.mxu0
  %v868 = vadd.f32 %v571, %v867
  %869 = vmatmul.f32.gmra.mxu0 %v662
  %v870 = vpop.f32.mrf.mxu0
  %v871 = vadd.f32 %v571, %v870
  %872 = vmatmul.f32.gmra.mxu0 %v665
  %v873 = vpop.f32.mrf.mxu0
  %v874 = vadd.f32 %v571, %v873
  %875 = vmatmul.f32.gmra.mxu0 %v668
  %v876 = vpop.f32.mrf.mxu0
  %v877 = vadd.f32 %v571, %v876
  %878 = vmatmul.f32.gmra.mxu0 %v671
  %v879 = vpop.f32.mrf.mxu0
  %v880 = vadd.f32 %v571, %v879
  %881 = vmatmul.f32.gmra.mxu0 %v674
  %v882 = vpop.f32.mrf.mxu0
  %v883 = vadd.f32 %v571, %v882
  %884 = vmatmul.f32.gmra.mxu0 %v677
  %v885 = vpop.f32.mrf.mxu0
  %v886 = vadd.f32 %v571, %v885
  %887 = vmatmul.f32.gmra.mxu0 %v680
  %v888 = vpop.f32.mrf.mxu0
  %v889 = vadd.f32 %v571, %v888
  %890 = vmatmul.f32.gmra.mxu0 %v683
  %v891 = vpop.f32.mrf.mxu0
  %v892 = vadd.f32 %v571, %v891
  %893 = vmatmul.f32.gmra.mxu0 %v686
  %v894 = vpop.f32.mrf.mxu0
  %v895 = vadd.f32 %v571, %v894
  %896 = vmatmul.f32.gmra.mxu0 %v689
  %v897 = vpop.f32.mrf.mxu0
  %v898 = vadd.f32 %v571, %v897
  %899 = vmatmul.f32.gmra.mxu0 %v692
  %v900 = vpop.f32.mrf.mxu0
  %v901 = vadd.f32 %v571, %v900
  %902 = vmatmul.f32.gmra.mxu0 %v695
  %v903 = vpop.f32.mrf.mxu0
  %v904 = vadd.f32 %v571, %v903
  %905 = vmatmul.f32.gmra.mxu0 %v698
  %v906 = vpop.f32.mrf.mxu0
  %v907 = vadd.f32 %v571, %v906
  %908 = vmatmul.f32.gmra.mxu0 %v701
  %v909 = vpop.f32.mrf.mxu0
  %v910 = vadd.f32 %v571, %v909
  %911 = vmatmul.f32.gmra.mxu0 %v704
  %v912 = vpop.f32.mrf.mxu0
  %v913 = vadd.f32 %v571, %v912
  %914 = vmatmul.f32.gmra.mxu0 %v707
  %v915 = vpop.f32.mrf.mxu0
  %v916 = vadd.f32 %v571, %v915
  %917 = vmatmul.f32.gmra.mxu0 %v710
  %v918 = vpop.f32.mrf.mxu0
  %v919 = vadd.f32 %v571, %v918
  %920 = vmatmul.f32.gmra.mxu0 %v713
  %v921 = vpop.f32.mrf.mxu0
  %v922 = vadd.f32 %v571, %v921
  %923 = vmatmul.f32.gmra.mxu0 %v716
  %v924 = vpop.f32.mrf.mxu0
  %v925 = vadd.f32 %v571, %v924
  %926 = vmatmul.f32.gmra.mxu0 %v719
  %v927 = vpop.f32.mrf.mxu0
  %v928 = vadd.f32 %v571, %v927
  %929 = vmatmul.f32.gmra.mxu0 %v722
  %v930 = vpop.f32.mrf.mxu0
  %v931 = vadd.f32 %v571, %v930
  %932 = vmatmul.f32.gmra.mxu0 %v725
  %v933 = vpop.f32.mrf.mxu0
  %v934 = vadd.f32 %v571, %v933
  %935 = vmatmul.f32.gmra.mxu0 %v728
  %v936 = vpop.f32.mrf.mxu0
  %v937 = vadd.f32 %v571, %v936
  %938 = vmatmul.f32.gmra.mxu0 %v731
  %v939 = vpop.f32.mrf.mxu0
  %v940 = vadd.f32 %v571, %v939
  %941 = vmatmul.f32.gmra.mxu0 %v734
  %v942 = vpop.f32.mrf.mxu0
  %v943 = vadd.f32 %v571, %v942
  %944 = vmatmul.f32.gmra.mxu0 %v737
  %v945 = vpop.f32.mrf.mxu0
  %v946 = vadd.f32 %v571, %v945
  %947 = vmatmul.f32.gmra.mxu0 %v740
  %v948 = vpop.f32.mrf.mxu0
  %v949 = vadd.f32 %v571, %v948
  %950 = vmatmul.f32.gmra.mxu0 %v743
  %v951 = vpop.f32.mrf.mxu0
  %v952 = vadd.f32 %v571, %v951
  %953 = vmatmul.f32.gmra.mxu0 %v746
  %v954 = vpop.f32.mrf.mxu0
  %v955 = vadd.f32 %v571, %v954
  %956 = vmatmul.f32.gmra.mxu0 %v749
  %v957 = vpop.f32.mrf.mxu0
  %v958 = vadd.f32 %v571, %v957
  %959 = vmatmul.f32.gmra.mxu0 %v752
  %v960 = vpop.f32.mrf.mxu0
  %v961 = vadd.f32 %v571, %v960
  %962 = vmatmul.f32.gmra.mxu0 %v755
  %v963 = vpop.f32.mrf.mxu0
  %v964 = vadd.f32 %v571, %v963
  %965 = vmatmul.f32.gmra.mxu0 %v758
  %v966 = vpop.f32.mrf.mxu0
  %v967 = vadd.f32 %v571, %v966
  %968 = vmatmul.f32.gmra.mxu0 %v761
  %v969 = vpop.f32.mrf.mxu0
  %v970 = vadd.f32 %v571, %v969
  %971 = vmatmul.f32.gmra.mxu0 %v764
  %v972 = vpop.f32.mrf.mxu0
  %v973 = vadd.f32 %v571, %v972
  %974 = vdwg.mxu0
  %v975 = vmax.f32 %v784, 0.0
  %v976 = vmax.f32 %v787, 0.0
  %v977 = vmax.f32 %v790, 0.0
  %v978 = vmax.f32 %v793, 0.0
  %v979 = vmax.f32 %v796, 0.0
  %v980 = vmax.f32 %v799, 0.0
  %v981 = vmax.f32 %v802, 0.0
  %v982 = vmax.f32 %v805, 0.0
  %v983 = vmax.f32 %v808, 0.0
  %v984 = vmax.f32 %v811, 0.0
  %v985 = vmax.f32 %v814, 0.0
  %v986 = vmax.f32 %v817, 0.0
  %v987 = vmax.f32 %v820, 0.0
  %v988 = vmax.f32 %v823, 0.0
  %v989 = vmax.f32 %v826, 0.0
  %v990 = vmax.f32 %v829, 0.0
  %v991 = vmax.f32 %v832, 0.0
  %v992 = vmax.f32 %v835, 0.0
  %v993 = vmax.f32 %v838, 0.0
  %v994 = vmax.f32 %v841, 0.0
  %v995 = vmax.f32 %v844, 0.0
  %v996 = vmax.f32 %v847, 0.0
  %v997 = vmax.f32 %v850, 0.0
  %v998 = vmax.f32 %v853, 0.0
  %v999 = vmax.f32 %v856, 0.0
  %v1000 = vmax.f32 %v859, 0.0
  %v1001 = vmax.f32 %v862, 0.0
  %v1002 = vmax.f32 %v865, 0.0
  %v1003 = vmax.f32 %v868, 0.0
  %v1004 = vmax.f32 %v871, 0.0
  %v1005 = vmax.f32 %v874, 0.0
  %v1006 = vmax.f32 %v877, 0.0
  %v1007 = vmax.f32 %v880, 0.0
  %v1008 = vmax.f32 %v883, 0.0
  %v1009 = vmax.f32 %v886, 0.0
  %v1010 = vmax.f32 %v889, 0.0
  %v1011 = vmax.f32 %v892, 0.0
  %v1012 = vmax.f32 %v895, 0.0
  %v1013 = vmax.f32 %v898, 0.0
  %v1014 = vmax.f32 %v901, 0.0
  %v1015 = vmax.f32 %v904, 0.0
  %v1016 = vmax.f32 %v907, 0.0
  %v1017 = vmax.f32 %v910, 0.0
  %v1018 = vmax.f32 %v913, 0.0
  %v1019 = vmax.f32 %v916, 0.0
  %v1020 = vmax.f32 %v919, 0.0
  %v1021 = vmax.f32 %v922, 0.0
  %v1022 = vmax.f32 %v925, 0.0
  %v1023 = vmax.f32 %v928, 0.0
  %v1024 = vmax.f32 %v931, 0.0
  %v1025 = vmax.f32 %v934, 0.0
  %v1026 = vmax.f32 %v937, 0.0
  %v1027 = vmax.f32 %v940, 0.0
  %v1028 = vmax.f32 %v943, 0.0
  %v1029 = vmax.f32 %v946, 0.0
  %v1030 = vmax.f32 %v949, 0.0
  %v1031 = vmax.f32 %v952, 0.0
  %v1032 = vmax.f32 %v955, 0.0
  %v1033 = vmax.f32 %v958, 0.0
  %v1034 = vmax.f32 %v961, 0.0
  %v1035 = vmax.f32 %v964, 0.0
  %v1036 = vmax.f32 %v967, 0.0
  %v1037 = vmax.f32 %v970, 0.0
  %v1038 = vmax.f32 %v973, 0.0
  %v1039 = vld [vmem:[%s5] sm:$0xff]
  %v1040 = vld [vmem:[%s5 + $0x8] sm:$0xff]
  %v1041 = vld [vmem:[%s5 + $0x10] sm:$0xff]
  %v1042 = vld [vmem:[%s5 + $0x18] sm:$0xff]
  %v1043 = vld [vmem:[%s6] sm:$0x1]
  %v1045 = vperm.slane %v1043, 0
  %v1048 = vsel %vm573, %v975, 0
  %v1051 = vsel %vm573, %v976, 0
  %v1054 = vsel %vm573, %v977, 0
  %v1057 = vsel %vm573, %v978, 0
  %v1060 = vsel %vm573, %v979, 0
  %v1063 = vsel %vm573, %v980, 0
  %v1066 = vsel %vm573, %v981, 0
  %v1069 = vsel %vm573, %v982, 0
  %v1072 = vsel %vm573, %v983, 0
  %v1075 = vsel %vm573, %v984, 0
  %v1078 = vsel %vm573, %v985, 0
  %v1081 = vsel %vm573, %v986, 0
  %v1084 = vsel %vm573, %v987, 0
  %v1087 = vsel %vm573, %v988, 0
  %v1090 = vsel %vm573, %v989, 0
  %v1093 = vsel %vm573, %v990, 0
  %v1096 = vsel %vm573, %v991, 0
  %v1099 = vsel %vm573, %v992, 0
  %v1102 = vsel %vm573, %v993, 0
  %v1105 = vsel %vm573, %v994, 0
  %v1108 = vsel %vm573, %v995, 0
  %v1111 = vsel %vm573, %v996, 0
  %v1114 = vsel %vm573, %v997, 0
  %v1117 = vsel %vm573, %v998, 0
  %v1120 = vsel %vm573, %v999, 0
  %v1123 = vsel %vm573, %v1000, 0
  %v1126 = vsel %vm573, %v1001, 0
  %v1129 = vsel %vm573, %v1002, 0
  %v1132 = vsel %vm573, %v1003, 0
  %v1135 = vsel %vm573, %v1004, 0
  %v1138 = vsel %vm573, %v1005, 0
  %v1141 = vsel %vm573, %v1006, 0
  %v1144 = vsel %vm573, %v1007, 0
  %v1147 = vsel %vm573, %v1008, 0
  %v1150 = vsel %vm573, %v1009, 0
  %v1153 = vsel %vm573, %v1010, 0
  %v1156 = vsel %vm573, %v1011, 0
  %v1159 = vsel %vm573, %v1012, 0
  %v1162 = vsel %vm573, %v1013, 0
  %v1165 = vsel %vm573, %v1014, 0
  %v1168 = vsel %vm573, %v1015, 0
  %v1171 = vsel %vm573, %v1016, 0
  %v1174 = vsel %vm573, %v1017, 0
  %v1177 = vsel %vm573, %v1018, 0
  %v1180 = vsel %vm573, %v1019, 0
  %v1183 = vsel %vm573, %v1020, 0
  %v1186 = vsel %vm573, %v1021, 0
  %v1189 = vsel %vm573, %v1022, 0
  %v1192 = vsel %vm573, %v1023, 0
  %v1195 = vsel %vm573, %v1024, 0
  %v1198 = vsel %vm573, %v1025, 0
  %v1201 = vsel %vm573, %v1026, 0
  %v1204 = vsel %vm573, %v1027, 0
  %v1207 = vsel %vm573, %v1028, 0
  %v1210 = vsel %vm573, %v1029, 0
  %v1213 = vsel %vm573, %v1030, 0
  %v1216 = vsel %vm573, %v1031, 0
  %v1219 = vsel %vm573, %v1032, 0
  %v1222 = vsel %vm573, %v1033, 0
  %v1225 = vsel %vm573, %v1034, 0
  %v1228 = vsel %vm573, %v1035, 0
  %v1231 = vsel %vm573, %v1036, 0
  %v1234 = vsel %vm573, %v1037, 0
  %v1237 = vsel %vm573, %v1038, 0
  %1239 = vmatpush.msra.mxu0 0.0
  %1240 = vmatpush.msra.mxu0 0.0
  %1241 = vmatpush.msra.mxu0 0.0
  %1242 = vmatpush.msra.mxu0 0.0
  %1243 = vmatpush.msra.mxu0 0.0
  %1244 = vmatpush.msra.mxu0 0.0
  %1245 = vmatpush.msra.mxu0 0.0
  %1246 = vmatpush.msra.mxu0 0.0
  %1247 = vmatpush.msra.mxu0 0.0
  %1248 = vmatpush.msra.mxu0 0.0
  %1249 = vmatpush.msra.mxu0 0.0
  %1250 = vmatpush.msra.mxu0 0.0
  %1251 = vmatpush.msra.mxu0 %v1042
  %1252 = vmatpush.msra.mxu0 %v1041
  %1253 = vmatpush.msra.mxu0 %v1040
  %1254 = vmatpush.msra.mxu0 %v1039
  %1255 = vmatmul.f32.gmra.mxu0 %v1048
  %v1256 = vpop.f32.mrf.mxu0
  %v1257 = vadd.f32 %v1045, %v1256
  %1258 = vmatmul.f32.gmra.mxu0 %v1051
  %v1259 = vpop.f32.mrf.mxu0
  %v1260 = vadd.f32 %v1045, %v1259
  %1261 = vmatmul.f32.gmra.mxu0 %v1054
  %v1262 = vpop.f32.mrf.mxu0
  %v1263 = vadd.f32 %v1045, %v1262
  %1264 = vmatmul.f32.gmra.mxu0 %v1057
  %v1265 = vpop.f32.mrf.mxu0
  %v1266 = vadd.f32 %v1045, %v1265
  %1267 = vmatmul.f32.gmra.mxu0 %v1060
  %v1268 = vpop.f32.mrf.mxu0
  %v1269 = vadd.f32 %v1045, %v1268
  %1270 = vmatmul.f32.gmra.mxu0 %v1063
  %v1271 = vpop.f32.mrf.mxu0
  %v1272 = vadd.f32 %v1045, %v1271
  %1273 = vmatmul.f32.gmra.mxu0 %v1066
  %v1274 = vpop.f32.mrf.mxu0
  %v1275 = vadd.f32 %v1045, %v1274
  %1276 = vmatmul.f32.gmra.mxu0 %v1069
  %v1277 = vpop.f32.mrf.mxu0
  %v1278 = vadd.f32 %v1045, %v1277
  %1279 = vmatmul.f32.gmra.mxu0 %v1072
  %v1280 = vpop.f32.mrf.mxu0
  %v1281 = vadd.f32 %v1045, %v1280
  %1282 = vmatmul.f32.gmra.mxu0 %v1075
  %v1283 = vpop.f32.mrf.mxu0
  %v1284 = vadd.f32 %v1045, %v1283
  %1285 = vmatmul.f32.gmra.mxu0 %v1078
  %v1286 = vpop.f32.mrf.mxu0
  %v1287 = vadd.f32 %v1045, %v1286
  %1288 = vmatmul.f32.gmra.mxu0 %v1081
  %v1289 = vpop.f32.mrf.mxu0
  %v1290 = vadd.f32 %v1045, %v1289
  %1291 = vmatmul.f32.gmra.mxu0 %v1084
  %v1292 = vpop.f32.mrf.mxu0
  %v1293 = vadd.f32 %v1045, %v1292
  %1294 = vmatmul.f32.gmra.mxu0 %v1087
  %v1295 = vpop.f32.mrf.mxu0
  %v1296 = vadd.f32 %v1045, %v1295
  %1297 = vmatmul.f32.gmra.mxu0 %v1090
  %v1298 = vpop.f32.mrf.mxu0
  %v1299 = vadd.f32 %v1045, %v1298
  %1300 = vmatmul.f32.gmra.mxu0 %v1093
  %v1301 = vpop.f32.mrf.mxu0
  %v1302 = vadd.f32 %v1045, %v1301
  %1303 = vmatmul.f32.gmra.mxu0 %v1096
  %v1304 = vpop.f32.mrf.mxu0
  %v1305 = vadd.f32 %v1045, %v1304
  %1306 = vmatmul.f32.gmra.mxu0 %v1099
  %v1307 = vpop.f32.mrf.mxu0
  %v1308 = vadd.f32 %v1045, %v1307
  %1309 = vmatmul.f32.gmra.mxu0 %v1102
  %v1310 = vpop.f32.mrf.mxu0
  %v1311 = vadd.f32 %v1045, %v1310
  %1312 = vmatmul.f32.gmra.mxu0 %v1105
  %v1313 = vpop.f32.mrf.mxu0
  %v1314 = vadd.f32 %v1045, %v1313
  %1315 = vmatmul.f32.gmra.mxu0 %v1108
  %v1316 = vpop.f32.mrf.mxu0
  %v1317 = vadd.f32 %v1045, %v1316
  %1318 = vmatmul.f32.gmra.mxu0 %v1111
  %v1319 = vpop.f32.mrf.mxu0
  %v1320 = vadd.f32 %v1045, %v1319
  %1321 = vmatmul.f32.gmra.mxu0 %v1114
  %v1322 = vpop.f32.mrf.mxu0
  %v1323 = vadd.f32 %v1045, %v1322
  %1324 = vmatmul.f32.gmra.mxu0 %v1117
  %v1325 = vpop.f32.mrf.mxu0
  %v1326 = vadd.f32 %v1045, %v1325
  %1327 = vmatmul.f32.gmra.mxu0 %v1120
  %v1328 = vpop.f32.mrf.mxu0
  %v1329 = vadd.f32 %v1045, %v1328
  %1330 = vmatmul.f32.gmra.mxu0 %v1123
  %v1331 = vpop.f32.mrf.mxu0
  %v1332 = vadd.f32 %v1045, %v1331
  %1333 = vmatmul.f32.gmra.mxu0 %v1126
  %v1334 = vpop.f32.mrf.mxu0
  %v1335 = vadd.f32 %v1045, %v1334
  %1336 = vmatmul.f32.gmra.mxu0 %v1129
  %v1337 = vpop.f32.mrf.mxu0
  %v1338 = vadd.f32 %v1045, %v1337
  %1339 = vmatmul.f32.gmra.mxu0 %v1132
  %v1340 = vpop.f32.mrf.mxu0
  %v1341 = vadd.f32 %v1045, %v1340
  %1342 = vmatmul.f32.gmra.mxu0 %v1135
  %v1343 = vpop.f32.mrf.mxu0
  %v1344 = vadd.f32 %v1045, %v1343
  %1345 = vmatmul.f32.gmra.mxu0 %v1138
  %v1346 = vpop.f32.mrf.mxu0
  %v1347 = vadd.f32 %v1045, %v1346
  %1348 = vmatmul.f32.gmra.mxu0 %v1141
  %v1349 = vpop.f32.mrf.mxu0
  %v1350 = vadd.f32 %v1045, %v1349
  %1351 = vmatmul.f32.gmra.mxu0 %v1144
  %v1352 = vpop.f32.mrf.mxu0
  %v1353 = vadd.f32 %v1045, %v1352
  %1354 = vmatmul.f32.gmra.mxu0 %v1147
  %v1355 = vpop.f32.mrf.mxu0
  %v1356 = vadd.f32 %v1045, %v1355
  %1357 = vmatmul.f32.gmra.mxu0 %v1150
  %v1358 = vpop.f32.mrf.mxu0
  %v1359 = vadd.f32 %v1045, %v1358
  %1360 = vmatmul.f32.gmra.mxu0 %v1153
  %v1361 = vpop.f32.mrf.mxu0
  %v1362 = vadd.f32 %v1045, %v1361
  %1363 = vmatmul.f32.gmra.mxu0 %v1156
  %v1364 = vpop.f32.mrf.mxu0
  %v1365 = vadd.f32 %v1045, %v1364
  %1366 = vmatmul.f32.gmra.mxu0 %v1159
  %v1367 = vpop.f32.mrf.mxu0
  %v1368 = vadd.f32 %v1045, %v1367
  %1369 = vmatmul.f32.gmra.mxu0 %v1162
  %v1370 = vpop.f32.mrf.mxu0
  %v1371 = vadd.f32 %v1045, %v1370
  %1372 = vmatmul.f32.gmra.mxu0 %v1165
  %v1373 = vpop.f32.mrf.mxu0
  %v1374 = vadd.f32 %v1045, %v1373
  %1375 = vmatmul.f32.gmra.mxu0 %v1168
  %v1376 = vpop.f32.mrf.mxu0
  %v1377 = vadd.f32 %v1045, %v1376
  %1378 = vmatmul.f32.gmra.mxu0 %v1171
  %v1379 = vpop.f32.mrf.mxu0
  %v1380 = vadd.f32 %v1045, %v1379
  %1381 = vmatmul.f32.gmra.mxu0 %v1174
  %v1382 = vpop.f32.mrf.mxu0
  %v1383 = vadd.f32 %v1045, %v1382
  %1384 = vmatmul.f32.gmra.mxu0 %v1177
  %v1385 = vpop.f32.mrf.mxu0
  %v1386 = vadd.f32 %v1045, %v1385
  %1387 = vmatmul.f32.gmra.mxu0 %v1180
  %v1388 = vpop.f32.mrf.mxu0
  %v1389 = vadd.f32 %v1045, %v1388
  %1390 = vmatmul.f32.gmra.mxu0 %v1183
  %v1391 = vpop.f32.mrf.mxu0
  %v1392 = vadd.f32 %v1045, %v1391
  %1393 = vmatmul.f32.gmra.mxu0 %v1186
  %v1394 = vpop.f32.mrf.mxu0
  %v1395 = vadd.f32 %v1045, %v1394
  %1396 = vmatmul.f32.gmra.mxu0 %v1189
  %v1397 = vpop.f32.mrf.mxu0
  %v1398 = vadd.f32 %v1045, %v1397
  %1399 = vmatmul.f32.gmra.mxu0 %v1192
  %v1400 = vpop.f32.mrf.mxu0
  %v1401 = vadd.f32 %v1045, %v1400
  %1402 = vmatmul.f32.gmra.mxu0 %v1195
  %v1403 = vpop.f32.mrf.mxu0
  %v1404 = vadd.f32 %v1045, %v1403
  %1405 = vmatmul.f32.gmra.mxu0 %v1198
  %v1406 = vpop.f32.mrf.mxu0
  %v1407 = vadd.f32 %v1045, %v1406
  %1408 = vmatmul.f32.gmra.mxu0 %v1201
  %v1409 = vpop.f32.mrf.mxu0
  %v1410 = vadd.f32 %v1045, %v1409
  %1411 = vmatmul.f32.gmra.mxu0 %v1204
  %v1412 = vpop.f32.mrf.mxu0
  %v1413 = vadd.f32 %v1045, %v1412
  %1414 = vmatmul.f32.gmra.mxu0 %v1207
  %v1415 = vpop.f32.mrf.mxu0
  %v1416 = vadd.f32 %v1045, %v1415
  %1417 = vmatmul.f32.gmra.mxu0 %v1210
  %v1418 = vpop.f32.mrf.mxu0
  %v1419 = vadd.f32 %v1045, %v1418
  %1420 = vmatmul.f32.gmra.mxu0 %v1213
  %v1421 = vpop.f32.mrf.mxu0
  %v1422 = vadd.f32 %v1045, %v1421
  %1423 = vmatmul.f32.gmra.mxu0 %v1216
  %v1424 = vpop.f32.mrf.mxu0
  %v1425 = vadd.f32 %v1045, %v1424
  %1426 = vmatmul.f32.gmra.mxu0 %v1219
  %v1427 = vpop.f32.mrf.mxu0
  %v1428 = vadd.f32 %v1045, %v1427
  %1429 = vmatmul.f32.gmra.mxu0 %v1222
  %v1430 = vpop.f32.mrf.mxu0
  %v1431 = vadd.f32 %v1045, %v1430
  %1432 = vmatmul.f32.gmra.mxu0 %v1225
  %v1433 = vpop.f32.mrf.mxu0
  %v1434 = vadd.f32 %v1045, %v1433
  %1435 = vmatmul.f32.gmra.mxu0 %v1228
  %v1436 = vpop.f32.mrf.mxu0
  %v1437 = vadd.f32 %v1045, %v1436
  %1438 = vmatmul.f32.gmra.mxu0 %v1231
  %v1439 = vpop.f32.mrf.mxu0
  %v1440 = vadd.f32 %v1045, %v1439
  %1441 = vmatmul.f32.gmra.mxu0 %v1234
  %v1442 = vpop.f32.mrf.mxu0
  %v1443 = vadd.f32 %v1045, %v1442
  %1444 = vmatmul.f32.gmra.mxu0 %v1237
  %v1445 = vpop.f32.mrf.mxu0
  %v1446 = vadd.f32 %v1045, %v1445
  %1447 = vdwg.mxu0
  %vm1448 = vcmask 23552
  %1449 = vst.msk [vmem:[%s7] sm:$0xff] %vm1448, %v1257
  %1450 = vst.msk [vmem:[%s7 + $0x8] sm:$0xff] %vm1448, %v1260
  %1451 = vst.msk [vmem:[%s7 + $0x10] sm:$0xff] %vm1448, %v1263
  %1452 = vst.msk [vmem:[%s7 + $0x18] sm:$0xff] %vm1448, %v1266
  %1453 = vst.msk [vmem:[%s7 + $0x20] sm:$0xff] %vm1448, %v1269
  %1454 = vst.msk [vmem:[%s7 + $0x28] sm:$0xff] %vm1448, %v1272
  %1455 = vst.msk [vmem:[%s7 + $0x30] sm:$0xff] %vm1448, %v1275
  %1456 = vst.msk [vmem:[%s7 + $0x38] sm:$0xff] %vm1448, %v1278
  %1457 = vst.msk [vmem:[%s7 + $0x40] sm:$0xff] %vm1448, %v1281
  %1458 = vst.msk [vmem:[%s7 + $0x48] sm:$0xff] %vm1448, %v1284
  %1459 = vst.msk [vmem:[%s7 + $0x50] sm:$0xff] %vm1448, %v1287
  %1460 = vst.msk [vmem:[%s7 + $0x58] sm:$0xff] %vm1448, %v1290
  %1461 = vst.msk [vmem:[%s7 + $0x60] sm:$0xff] %vm1448, %v1293
  %1462 = vst.msk [vmem:[%s7 + $0x68] sm:$0xff] %vm1448, %v1296
  %1463 = vst.msk [vmem:[%s7 + $0x70] sm:$0xff] %vm1448, %v1299
  %1464 = vst.msk [vmem:[%s7 + $0x78] sm:$0xff] %vm1448, %v1302
  %1465 = vst.msk [vmem:[%s7 + $0x80] sm:$0xff] %vm1448, %v1305
  %1466 = vst.msk [vmem:[%s7 + $0x88] sm:$0xff] %vm1448, %v1308
  %1467 = vst.msk [vmem:[%s7 + $0x90] sm:$0xff] %vm1448, %v1311
  %1468 = vst.msk [vmem:[%s7 + $0x98] sm:$0xff] %vm1448, %v1314
  %1469 = vst.msk [vmem:[%s7 + $0xa0] sm:$0xff] %vm1448, %v1317
  %1470 = vst.msk [vmem:[%s7 + $0xa8] sm:$0xff] %vm1448, %v1320
  %1471 = vst.msk [vmem:[%s7 + $0xb0] sm:$0xff] %vm1448, %v1323
  %1472 = vst.msk [vmem:[%s7 + $0xb8] sm:$0xff] %vm1448, %v1326
  %1473 = vst.msk [vmem:[%s7 + $0xc0] sm:$0xff] %vm1448, %v1329
  %1474 = vst.msk [vmem:[%s7 + $0xc8] sm:$0xff] %vm1448, %v1332
  %1475 = vst.msk [vmem:[%s7 + $0xd0] sm:$0xff] %vm1448, %v1335
  %1476 = vst.msk [vmem:[%s7 + $0xd8] sm:$0xff] %vm1448, %v1338
  %1477 = vst.msk [vmem:[%s7 + $0xe0] sm:$0xff] %vm1448, %v1341
  %1478 = vst.msk [vmem:[%s7 + $0xe8] sm:$0xff] %vm1448, %v1344
  %1479 = vst.msk [vmem:[%s7 + $0xf0] sm:$0xff] %vm1448, %v1347
  %1480 = vst.msk [vmem:[%s7 + $0xf8] sm:$0xff] %vm1448, %v1350
  %1481 = vst.msk [vmem:[%s7 + $0x100] sm:$0xff] %vm1448, %v1353
  %1482 = vst.msk [vmem:[%s7 + $0x108] sm:$0xff] %vm1448, %v1356
  %1483 = vst.msk [vmem:[%s7 + $0x110] sm:$0xff] %vm1448, %v1359
  %1484 = vst.msk [vmem:[%s7 + $0x118] sm:$0xff] %vm1448, %v1362
  %1485 = vst.msk [vmem:[%s7 + $0x120] sm:$0xff] %vm1448, %v1365
  %1486 = vst.msk [vmem:[%s7 + $0x128] sm:$0xff] %vm1448, %v1368
  %1487 = vst.msk [vmem:[%s7 + $0x130] sm:$0xff] %vm1448, %v1371
  %1488 = vst.msk [vmem:[%s7 + $0x138] sm:$0xff] %vm1448, %v1374
  %1489 = vst.msk [vmem:[%s7 + $0x140] sm:$0xff] %vm1448, %v1377
  %1490 = vst.msk [vmem:[%s7 + $0x148] sm:$0xff] %vm1448, %v1380
  %1491 = vst.msk [vmem:[%s7 + $0x150] sm:$0xff] %vm1448, %v1383
  %1492 = vst.msk [vmem:[%s7 + $0x158] sm:$0xff] %vm1448, %v1386
  %1493 = vst.msk [vmem:[%s7 + $0x160] sm:$0xff] %vm1448, %v1389
  %1494 = vst.msk [vmem:[%s7 + $0x168] sm:$0xff] %vm1448, %v1392
  %1495 = vst.msk [vmem:[%s7 + $0x170] sm:$0xff] %vm1448, %v1395
  %1496 = vst.msk [vmem:[%s7 + $0x178] sm:$0xff] %vm1448, %v1398
  %1497 = vst.msk [vmem:[%s7 + $0x180] sm:$0xff] %vm1448, %v1401
  %1498 = vst.msk [vmem:[%s7 + $0x188] sm:$0xff] %vm1448, %v1404
  %1499 = vst.msk [vmem:[%s7 + $0x190] sm:$0xff] %vm1448, %v1407
  %1500 = vst.msk [vmem:[%s7 + $0x198] sm:$0xff] %vm1448, %v1410
  %1501 = vst.msk [vmem:[%s7 + $0x1a0] sm:$0xff] %vm1448, %v1413
  %1502 = vst.msk [vmem:[%s7 + $0x1a8] sm:$0xff] %vm1448, %v1416
  %1503 = vst.msk [vmem:[%s7 + $0x1b0] sm:$0xff] %vm1448, %v1419
  %1504 = vst.msk [vmem:[%s7 + $0x1b8] sm:$0xff] %vm1448, %v1422
  %1505 = vst.msk [vmem:[%s7 + $0x1c0] sm:$0xff] %vm1448, %v1425
  %1506 = vst.msk [vmem:[%s7 + $0x1c8] sm:$0xff] %vm1448, %v1428
  %1507 = vst.msk [vmem:[%s7 + $0x1d0] sm:$0xff] %vm1448, %v1431
  %1508 = vst.msk [vmem:[%s7 + $0x1d8] sm:$0xff] %vm1448, %v1434
  %1509 = vst.msk [vmem:[%s7 + $0x1e0] sm:$0xff] %vm1448, %v1437
  %1510 = vst.msk [vmem:[%s7 + $0x1e8] sm:$0xff] %vm1448, %v1440
  %1511 = vst.msk [vmem:[%s7 + $0x1f0] sm:$0xff] %vm1448, %v1443
  %1512 = vst.msk [vmem:[%s7 + $0x1f8] sm:$0xff] %vm1448, %v1446
  // Predicated region
  $region30: #{tpu_custom_call.1} parent=0 // pred_check
    _
  $region31: #{tpu_custom_call.1} parent=0 // pred_check_branch
    %1514 = sbr.rel (0) target = $region33
  $region32: #{tpu_custom_call.1} parent=0 // pred_region
    _
  $region33: #{tpu_custom_call.1} parent=0 // pred_fallthru
    _
  // Predicated region
  $region34: #{tpu_custom_call.1} parent=0 // pred_check
    _
  $region35: #{tpu_custom_call.1} parent=0 // pred_check_branch
    %1516 = sbr.rel (0) target = $region37
  $region36: #{tpu_custom_call.1} parent=0 // pred_region
    _
  $region37: #{tpu_custom_call.1} parent=0 // pred_fallthru
    _

</llo_original>
